<compile_context>
chip_gen: v5e
topology: v5e:2x2
jax: 0.10.0
libtpu: 0.0.40
codegen_flags: <defaults>
</compile_context>

<pallas_src>
import functools
import math

import jax
import jax.numpy as jnp
from jax.experimental import pallas as pl
from jax.experimental.pallas import tpu as pltpu

# ~2 MiB of each image-like input per grid step (measured tiled f32-add data:
# 1-4 MiB tiles reach 85-86% of HBM roofline).  b-path: 3 inputs x 2 pipeline
# buffers x 2 MiB ~= 12-13 MiB of VMEM.
TARGET_BLOCK_BYTES = 2 * 1024 * 1024
VMEM_LIMIT_BYTES = 32 * 1024 * 1024


# ---------------------------------------------------------------------------
# Kernel
# ---------------------------------------------------------------------------

def _criterion_kernel(*refs, has_b, inv_batch, total_rows, block_rows,
                      blocks_per_partial, eps):
    """KL(mu, logvar) + partial sum of the reconstruction terms.

    Grid = (num_partials ["parallel"], blocks_per_partial ["arbitrary"]).
    Each partial writes its own (1,1) SMEM slot; the wrapper sums the slots.
    """
    if has_b:
        mu_ref, lv_ref, x_ref, y_ref, b_ref, kl_ref, rc_ref, acc_ref = refs
    else:
        mu_ref, lv_ref, x_ref, y_ref, kl_ref, rc_ref, acc_ref = refs
        b_ref = None

    p = pl.program_id(0)   # partial-sum slot (both TensorCores on v7x)
    i = pl.program_id(1)   # row-block index within this partial

    @pl.when(i == 0)
    def _init():
        acc_ref[...] = jnp.zeros_like(acc_ref)
        # KL: (-0.5 / B) * sum(1 + logvar - mu^2 - exp(logvar)).
        # Only partial 0 contributes; other partials write 0 so every output
        # slot is defined (important for megacore writeback).
        mu = mu_ref[...].astype(jnp.float32)
        lv = lv_ref[...].astype(jnp.float32)
        term = 1.0 + lv - mu * mu - jnp.exp(lv)
        kl = (-0.5 * inv_batch) * jnp.sum(term)
        kl_ref[0, 0] = jnp.where(p == 0, kl, 0.0)

    # Valid-row mask: covers the ragged tail of the last real block and the
    # fully-masked overflow step of the last partial when nblocks is odd.
    row_start = (p * blocks_per_partial + i) * block_rows
    row_ids = jax.lax.broadcasted_iota(jnp.int32, x_ref.shape, 0)
    valid = (row_ids + row_start) < total_rows

    x = x_ref[...].astype(jnp.float32)
    y = y_ref[...].astype(jnp.float32)
    if has_b:
        bc = jnp.maximum(b_ref[...].astype(jnp.float32), eps)
        # EUP reciprocal (approx) + EUP log; abs/mul/add on the VALU.
        val = jnp.abs(x - y) * pl.reciprocal(bc, approx=True) + jnp.log(bc)
    else:
        val = jnp.abs(x - y)
    val = jnp.where(valid, val, 0.0)

    # Vreg-shaped running sum: per-step sublane reduce (XLU slot) + VALU add,
    # no per-step cross-lane reduce or SMEM scalar round-trip.
    acc_ref[...] += jnp.sum(val, axis=0, keepdims=True)

    @pl.when(i == pl.num_programs(1) - 1)
    def _finalize():
        rc_ref[0, 0] = jnp.sum(acc_ref[...])


# ---------------------------------------------------------------------------
# Wrapper
# ---------------------------------------------------------------------------

def criterion_losses(mu, logvar, depth, target, b=None, eps=1e-6,
                     target_block_bytes=TARGET_BLOCK_BYTES):
    """Returns (kl_div, recon_loss) from a single fused Pallas call."""
    B = int(mu.shape[0])
    n_elems = int(math.prod(depth.shape))
    W = int(depth.shape[-1])
    rows = n_elems // W

    # Pure leading-dim collapse: the lane (last) dim stays W, so this is layout
    # plumbing (no (8,128) relayout, no pad copy) rather than an HBM rewrite.
    x2d = depth.reshape(rows, W)
    y2d = target.reshape(rows, W)
    operands = [mu, logvar, x2d, y2d]
    if b is not None:
        operands.append(b.reshape(rows, W))

    # Row-block size: ~target_block_bytes per input per grid step, a multiple
    # of 8 sublanes, or the full array when it is small.
    itemsize = jnp.dtype(depth.dtype).itemsize
    block_rows = max(8, (int(target_block_bytes) // (W * itemsize)) // 8 * 8)
    if block_rows >= rows:
        block_rows = rows
    nblocks = -(-rows // block_rows)

    # Two partial sums along a leading "parallel" axis (v7x: 2 TensorCores).
    num_partials = 2 if nblocks >= 2 else 1
    blocks_per_partial = -(-nblocks // num_partials)
    grid = (num_partials, blocks_per_partial)

    def img_index_map(p, i):
        # Clamp so the overflow step of the last partial re-reads a valid block
        # (its rows are then fully masked inside the kernel).
        return (jnp.minimum(p * blocks_per_partial + i, nblocks - 1), 0)

    img_spec = pl.BlockSpec((block_rows, W), img_index_map)
    latent_spec = pl.BlockSpec(mu.shape, lambda p, i: (0, 0))
    out_spec = pl.BlockSpec((1, 1), lambda p, i: (p, 0),
                            memory_space=pltpu.SMEM)

    inv_batch = 1.0 / float(B)
    inv_n = 1.0 / float(n_elems)

    kernel = functools.partial(
        _criterion_kernel, has_b=(b is not None), inv_batch=inv_batch,
        total_rows=rows, block_rows=block_rows,
        blocks_per_partial=blocks_per_partial, eps=float(eps))

    if b is None:
        flops = 5 * int(mu.size) + 4 * n_elems
        transcendentals = int(mu.size)
    else:
        flops = 5 * int(mu.size) + 7 * n_elems
        transcendentals = int(mu.size) + 2 * n_elems
    bytes_accessed = sum(int(o.size) * jnp.dtype(o.dtype).itemsize
                         for o in operands) + 16

    # TODO(synk): if DMA is still exposed in the trace after the larger tiles,
    # sweep pipeline_mode=pl.Buffered(3) on img_spec (skip on v7x if VMEM is
    # tight).
    kl_parts, rc_parts = pl.pallas_call(
        kernel,
        out_shape=(jax.ShapeDtypeStruct((num_partials, 1), jnp.float32),
                   jax.ShapeDtypeStruct((num_partials, 1), jnp.float32)),
        grid=grid,
        in_specs=[latent_spec, latent_spec] + [img_spec] * (len(operands) - 2),
        out_specs=(out_spec, out_spec),
        scratch_shapes=[pltpu.VMEM((1, W), jnp.float32)],
        compiler_params=pltpu.CompilerParams(
            dimension_semantics=("parallel", "arbitrary"),
            vmem_limit_bytes=VMEM_LIMIT_BYTES),
        cost_estimate=pl.CostEstimate(flops=int(flops),
                                      transcendentals=int(transcendentals),
                                      bytes_accessed=int(bytes_accessed)),
    )(*operands)

    kl = jnp.sum(kl_parts)
    rc = jnp.sum(rc_parts) * inv_n
    return kl, rc


class Criterion:
    """JAX/Pallas port of codeslam.models.loss.Criterion forward pass."""

    def __init__(self, cfg=None):
        # The PyTorch module has no parameters.
        pass

    def __call__(self, depth, mu, logvar, target, b=None, image=None):
        kl_div, recon_loss = criterion_losses(mu, logvar, depth, target, b=b)
        # TODO(synk): edge_aware_smoothness / uncertainty_aware_smoothness are
        # referenced but not defined in the provided PyTorch source and are not
        # returned in the loss dict, so they are omitted here.
        return dict(kl_div=kl_div, recon_loss=recon_loss)


# ---------------------------------------------------------------------------
# Main
# ---------------------------------------------------------------------------

if __name__ == "__main__":
    key = jax.random.PRNGKey(0)
    k1, k2, k3, k4, k5 = jax.random.split(key, 5)

    B, C, H, W = 2, 1, 16, 16     # depth map: batch=2, 1 channel, 16x16
    Z = 32                        # latent dim

    depth = jax.random.normal(k1, (B, C, H, W), dtype=jnp.float32)
    target = jax.random.normal(k2, (B, C, H, W), dtype=jnp.float32)
    mu = jax.random.normal(k3, (B, Z), dtype=jnp.float32)
    logvar = 0.1 * jax.random.normal(k4, (B, Z), dtype=jnp.float32)
    b = jax.nn.softplus(jax.random.normal(k5, (B, C, H, W), dtype=jnp.float32))

    crit = Criterion(cfg=None)

    # Forward pass exactly as in the PyTorch module (b=None, image=None path).
    losses = crit(depth, mu, logvar, target, b=None, image=None)
    jax.block_until_ready(losses)

    # Also exercise the b-weighted reconstruction path (same fused kernel).
    losses_b = crit(depth, mu, logvar, target, b=b, image=None)
    jax.block_until_ready(losses_b)

    # Pure-JAX references.
    kl_ref = jnp.mean(-0.5 * jnp.sum(1.0 + logvar - mu**2 - jnp.exp(logvar), axis=1))
    recon_ref = jnp.mean(jnp.abs(depth - target))
    bc = jnp.maximum(b, 1e-6)
    recon_b_ref = jnp.mean(
        jnp.mean(jnp.abs(depth - target) / bc + jnp.log(bc), axis=(2, 3)))

    assert jnp.allclose(losses["kl_div"], kl_ref, atol=1e-5, rtol=1e-5)
    assert jnp.allclose(losses["recon_loss"], recon_ref, atol=1e-5, rtol=1e-5)
    assert jnp.allclose(losses_b["kl_div"], kl_ref, atol=1e-5, rtol=1e-5)
    # The b-path uses the EUP approximate reciprocal (~2^-12 relative error),
    # so the tolerance is relaxed accordingly.
    assert jnp.allclose(losses_b["recon_loss"], recon_b_ref, atol=5e-3, rtol=5e-3)

    # Exercise the multi-block / two-partial / ragged-tail path at a small
    # shape by forcing a tiny row-block target (100 rows, 16-row blocks,
    # 7 blocks split over 2 partials -> clamped + fully-masked overflow step).
    H2 = 50
    d2 = jax.random.normal(k1, (B, C, H2, W), dtype=jnp.float32)
    t2 = jax.random.normal(k2, (B, C, H2, W), dtype=jnp.float32)
    b2 = jax.nn.softplus(jax.random.normal(k5, (B, C, H2, W), dtype=jnp.float32))
    kl2, rc2 = criterion_losses(mu, logvar, d2, t2, b=b2,
                                target_block_bytes=1024)
    jax.block_until_ready((kl2, rc2))
    bc2 = jnp.maximum(b2, 1e-6)
    rc2_ref = jnp.mean(
        jnp.mean(jnp.abs(d2 - t2) / bc2 + jnp.log(bc2), axis=(2, 3)))
    assert jnp.allclose(kl2, kl_ref, atol=1e-5, rtol=1e-5)
    assert jnp.allclose(rc2, rc2_ref, atol=5e-3, rtol=5e-3)

    print("KERNEL_OK")
</pallas_src>

<mosaic_0001>
module attributes {stable_mosaic.version = 11 : i64} {
  func.func @_criterion_kernel(%arg0: i32, %arg1: i32, %arg2: memref<2x32xf32, #tpu.memory_space<vmem>>, %arg3: memref<2x32xf32, #tpu.memory_space<vmem>>, %arg4: memref<32x16xf32, #tpu.memory_space<vmem>>, %arg5: memref<32x16xf32, #tpu.memory_space<vmem>>, %arg6: memref<1x1xf32, #tpu.memory_space<smem>>, %arg7: memref<1x1xf32, #tpu.memory_space<smem>>, %arg8: memref<1x16xf32, #tpu.memory_space<vmem>>) attributes {dimension_semantics = [#tpu.dimension_semantics<parallel>, #tpu.dimension_semantics<arbitrary>], iteration_bounds = array<i64: 1, 1>, scalar_prefetch = 0 : i64, scratch_operands = 1 : i64, tpu.core_type = #tpu.core_type<tc>, window_params = [{pipeline_mode = #tpu.pipeline_mode<synchronous>, transform_indices = @transform_0, window_bounds = array<i64: 2, 32>}, {pipeline_mode = #tpu.pipeline_mode<synchronous>, transform_indices = @transform_1, window_bounds = array<i64: 2, 32>}, {transform_indices = @transform_2, window_bounds = array<i64: 32, 16>}, {transform_indices = @transform_3, window_bounds = array<i64: 32, 16>}, {transform_indices = @transform_4, window_bounds = array<i64: 1, 1>}, {transform_indices = @transform_5, window_bounds = array<i64: 1, 1>}]} {
    %c0_i32 = arith.constant 0 : i32
    %0 = arith.cmpi eq, %arg1, %c0_i32 : i32
    %1 = arith.extui %0 : i1 to i32
    %c0_i32_0 = arith.constant 0 : i32
    %2 = arith.cmpi ne, %1, %c0_i32_0 : i32
    scf.if %2 {
      %cst_12 = arith.constant 0.000000e+00 : f32
      %25 = vector.broadcast %cst_12 : f32 to vector<1x16xf32>
      %c0_13 = arith.constant 0 : index
      %c0_14 = arith.constant 0 : index
      %26 = vector.load %arg8[%c0_13, %c0_14] : memref<1x16xf32, #tpu.memory_space<vmem>>, vector<1x16xf32>
      tpu.vector_store %arg8[%c0_13, %c0_14], %25 {strides = array<i32>} : memref<1x16xf32, #tpu.memory_space<vmem>>, vector<1x16xf32>,
      %c0_15 = arith.constant 0 : index
      %c0_16 = arith.constant 0 : index
      %27 = vector.load %arg2[%c0_15, %c0_16] : memref<2x32xf32, #tpu.memory_space<vmem>>, vector<2x32xf32>
      %c0_17 = arith.constant 0 : index
      %c0_18 = arith.constant 0 : index
      %28 = vector.load %arg3[%c0_17, %c0_18] : memref<2x32xf32, #tpu.memory_space<vmem>>, vector<2x32xf32>
      %cst_19 = arith.constant 1.000000e+00 : f32
      %29 = vector.broadcast %cst_19 : f32 to vector<2x32xf32>
      %30 = arith.addf %29, %28 : vector<2x32xf32>
      %31 = arith.mulf %27, %27 : vector<2x32xf32>
      %32 = arith.subf %30, %31 : vector<2x32xf32>
      %33 = math.exp %28 : vector<2x32xf32>
      %34 = arith.subf %32, %33 : vector<2x32xf32>
      %35 = vector.shape_cast %34 : vector<2x32xf32> to vector<1x2x32xf32>
      %cst_20 = arith.constant dense<0.000000e+00> : vector<1xf32>
      %36 = vector.multi_reduction <add>, %35, %cst_20 [1, 2] : vector<1x2x32xf32> to vector<1xf32>
      %37 = vector.shape_cast %36 : vector<1xf32> to vector<1x1x1xf32>
      %38 = vector.extract %37[0, 0, 0] : f32 from vector<1x1x1xf32>
      %cst_21 = arith.constant -2.500000e-01 : f32
      %39 = arith.mulf %cst_21, %38 : f32
      %c0_i32_22 = arith.constant 0 : i32
      %40 = arith.cmpi eq, %arg0, %c0_i32_22 : i32
      %cst_23 = arith.constant 0.000000e+00 : f32
      %41 = arith.select %40, %39, %cst_23 : f32
      %c0_24 = arith.constant 0 : index
      %c0_25 = arith.constant 0 : index
      %42 = memref.load %arg6[%c0_24, %c0_25] : memref<1x1xf32, #tpu.memory_space<smem>>
      memref.store %41, %arg6[%c0_24, %c0_25] : memref<1x1xf32, #tpu.memory_space<smem>>
    } else {
    }
    %c1_i32 = arith.constant 1 : i32
    %3 = arith.muli %arg0, %c1_i32 : i32
    %4 = arith.addi %3, %arg1 : i32
    %c32_i32 = arith.constant 32 : i32
    %5 = arith.muli %4, %c32_i32 : i32
    %6 = tpu.iota {dimensions = array<i32: 0>} : vector<32x16xi32>
    %7 = vector.broadcast %5 : i32 to vector<32x16xi32>
    %8 = arith.addi %6, %7 : vector<32x16xi32>
    %c32_i32_1 = arith.constant 32 : i32
    %9 = vector.broadcast %c32_i32_1 : i32 to vector<32x16xi32>
    %10 = arith.cmpi slt, %8, %9 : vector<32x16xi32>
    %c0 = arith.constant 0 : index
    %c0_2 = arith.constant 0 : index
    %11 = vector.load %arg4[%c0, %c0_2] : memref<32x16xf32, #tpu.memory_space<vmem>>, vector<32x16xf32>
    %c0_3 = arith.constant 0 : index
    %c0_4 = arith.constant 0 : index
    %12 = vector.load %arg5[%c0_3, %c0_4] : memref<32x16xf32, #tpu.memory_space<vmem>>, vector<32x16xf32>
    %13 = arith.subf %11, %12 : vector<32x16xf32>
    %14 = math.absf %13 : vector<32x16xf32>
    %cst = arith.constant 0.000000e+00 : f32
    %15 = vector.broadcast %cst : f32 to vector<32x16xf32>
    %16 = arith.select %10, %14, %15 : vector<32x16xi1>, vector<32x16xf32>
    %c0_5 = arith.constant 0 : index
    %c0_6 = arith.constant 0 : index
    %17 = vector.load %arg8[%c0_5, %c0_6] : memref<1x16xf32, #tpu.memory_space<vmem>>, vector<1x16xf32>
    %cst_7 = arith.constant dense<0.000000e+00> : vector<16xf32>
    %18 = vector.multi_reduction <add>, %16, %cst_7 [0] : vector<32x16xf32> to vector<16xf32>
    %19 = vector.shape_cast %18 : vector<16xf32> to vector<1x16xf32>
    %20 = arith.addf %17, %19 : vector<1x16xf32>
    %c0_8 = arith.constant 0 : index
    %c0_9 = arith.constant 0 : index
    %21 = vector.load %arg8[%c0_8, %c0_9] : memref<1x16xf32, #tpu.memory_space<vmem>>, vector<1x16xf32>
    tpu.vector_store %arg8[%c0_8, %c0_9], %20 {strides = array<i32>} : memref<1x16xf32, #tpu.memory_space<vmem>>, vector<1x16xf32>,
    %c0_i32_10 = arith.constant 0 : i32
    %22 = arith.cmpi eq, %arg1, %c0_i32_10 : i32
    %23 = arith.extui %22 : i1 to i32
    %c0_i32_11 = arith.constant 0 : i32
    %24 = arith.cmpi ne, %23, %c0_i32_11 : i32
    scf.if %24 {
      %c0_12 = arith.constant 0 : index
      %c0_13 = arith.constant 0 : index
      %25 = vector.load %arg8[%c0_12, %c0_13] : memref<1x16xf32, #tpu.memory_space<vmem>>, vector<1x16xf32>
      %26 = vector.shape_cast %25 : vector<1x16xf32> to vector<1x1x16xf32>
      %cst_14 = arith.constant dense<0.000000e+00> : vector<1xf32>
      %27 = vector.multi_reduction <add>, %26, %cst_14 [1, 2] : vector<1x1x16xf32> to vector<1xf32>
      %28 = vector.shape_cast %27 : vector<1xf32> to vector<1x1x1xf32>
      %29 = vector.extract %28[0, 0, 0] : f32 from vector<1x1x1xf32>
      %c0_15 = arith.constant 0 : index
      %c0_16 = arith.constant 0 : index
      %30 = memref.load %arg7[%c0_15, %c0_16] : memref<1x1xf32, #tpu.memory_space<smem>>
      memref.store %29, %arg7[%c0_15, %c0_16] : memref<1x1xf32, #tpu.memory_space<smem>>
    } else {
    }
    return
  }
  func.func @transform_0(%arg0: i32, %arg1: i32) -> (i32, i32) {
    %c0_i32 = arith.constant 0 : i32
    %c0_i32_0 = arith.constant 0 : i32
    %c0_i32_1 = arith.constant 0 : i32
    return %c0_i32, %c0_i32_0 : i32, i32
  }
  func.func @transform_1(%arg0: i32, %arg1: i32) -> (i32, i32) {
    %c0_i32 = arith.constant 0 : i32
    %c0_i32_0 = arith.constant 0 : i32
    %c0_i32_1 = arith.constant 0 : i32
    return %c0_i32, %c0_i32_0 : i32, i32
  }
  func.func @transform_2(%arg0: i32, %arg1: i32) -> (i32, i32) {
    %c1_i32 = arith.constant 1 : i32
    %0 = arith.muli %arg0, %c1_i32 : i32
    %1 = arith.addi %0, %arg1 : i32
    %c0_i32 = arith.constant 0 : i32
    %2 = arith.minsi %1, %c0_i32 : i32
    %c0_i32_0 = arith.constant 0 : i32
    %c0_i32_1 = arith.constant 0 : i32
    return %2, %c0_i32_0 : i32, i32
  }
  func.func @transform_3(%arg0: i32, %arg1: i32) -> (i32, i32) {
    %c1_i32 = arith.constant 1 : i32
    %0 = arith.muli %arg0, %c1_i32 : i32
    %1 = arith.addi %0, %arg1 : i32
    %c0_i32 = arith.constant 0 : i32
    %2 = arith.minsi %1, %c0_i32 : i32
    %c0_i32_0 = arith.constant 0 : i32
    %c0_i32_1 = arith.constant 0 : i32
    return %2, %c0_i32_0 : i32, i32
  }
  func.func @transform_4(%arg0: i32, %arg1: i32) -> (i32, i32) {
    %c0_i32 = arith.constant 0 : i32
    %c0_i32_0 = arith.constant 0 : i32
    return %arg0, %c0_i32 : i32, i32
  }
  func.func @transform_5(%arg0: i32, %arg1: i32) -> (i32, i32) {
    %c0_i32 = arith.constant 0 : i32
    %c0_i32_0 = arith.constant 0 : i32
    return %arg0, %c0_i32 : i32, i32
  }
}

</mosaic_0001>

<llo_original>
// kernel: tpu_custom_call.1
$region0: #{tpu_custom_call.1}
  #allocation0 [shape = 'u32[]', space=smem, size = 0x4, offset = 0x4, fixed_abs, tag = 'smem constant byte address 0x4 - core index']
  #allocation1 [shape = 'u32[72,128]{1,0:T(1,128)}', space=vmem, size = 0x9000, scoped, tag = 'internal scratch']
  #allocation2 [shape = 'f32[1,16]{1,0:T(1,128)}', space=vmem, size = 0x200, scoped, tag = 'scratch operand']
  %s0 = inlined_call_operand.vmem [shape: f32[2,32], index: 0, kind: input, shape index: {}]
  %s1 = inlined_call_operand.vmem [shape: f32[2,32], index: 1, kind: input, shape index: {}]
  %s2 = inlined_call_operand.vmem [shape: f32[32,16], index: 2, kind: input, shape index: {}]
  %s3 = inlined_call_operand.vmem [shape: f32[32,16], index: 3, kind: input, shape index: {}]
  %s4 = inlined_call_operand.hbm [shape: f32[1,1], index: 4, kind: output, shape index: {0}]
  %s5 = inlined_call_operand.hbm [shape: f32[1,1], index: 5, kind: output, shape index: {1}]
  %6 = xla_tuple %s4, %s5
  %s7 = sld [smem:[#allocation0]]
  $region42: #{tpu_custom_call.1} parent=0
    _
  %s9 = ssub.s32 1, %s7
  %s10 = scalar_select 0, %s9, %s7
  $region1: #{tpu_custom_call.1} parent=0
    #allocation3 [shape = 'u8[512]{0}', space=smem, size = 0x200, scoped, tag = 'output window, operand 0, single buffered']
    #allocation4 [shape = 's32[1]{0}', space=sflag, size = 0x4, scoped, tag = 'scoped memory for tpu_custom_call.1']
    #allocation5 [shape = 'u8[512]{0}', space=smem, size = 0x200, scoped, tag = 'output window, operand 1, single buffered']
    #allocation6 [shape = 's32[1]{0}', space=sflag, size = 0x4, scoped, tag = 'scoped memory for tpu_custom_call.1']
    %11 = vsyncpa [#allocation4], 0
    %12 = vsyncpa [#allocation6], 0
    // Predicated region
    $region2: #{tpu_custom_call.1} parent=1 // pred_check
      _
    $region3: #{tpu_custom_call.1} parent=1 // pred_check_branch
      %14 = sbr.rel (0) target = $region5
    $region4: #{tpu_custom_call.1} parent=1 // pred_region
      _
    $region5: #{tpu_custom_call.1} parent=1 // pred_fallthru
      _
    // Predicated region
    $region6: #{tpu_custom_call.1} parent=1 // pred_check
      _
    $region7: #{tpu_custom_call.1} parent=1 // pred_check_branch
      %16 = sbr.rel (0) target = $region9
    $region8: #{tpu_custom_call.1} parent=1 // pred_region
      _
    $region9: #{tpu_custom_call.1} parent=1 // pred_fallthru
      _
    // Predicated region
    $region10: #{tpu_custom_call.1} parent=1 // pred_check
      _
    $region11: #{tpu_custom_call.1} parent=1 // pred_check_branch
      %18 = sbr.rel (0) target = $region13
    $region12: #{tpu_custom_call.1} parent=1 // pred_region
      %s19 = sadd.s32 0, 0
      %p20 = scmp.lt.s32.totalorder %s19, 0
      %s21 = scalar_select %p20, %s19, 0
      %s22 = smul.u32 4, %s21
      %p23 = scmp.lt.s32.totalorder %s22, 3
      %s24 = scalar_select %p23, %s22, 3
      %s25 = smul.addr %s24, 8
      %s26 = scalar_lea.vmem %s2, %s25
      %s27 = sadd.s32 0, 0
      %p28 = scmp.lt.s32.totalorder %s27, 0
      %s29 = scalar_select %p28, %s27, 0
      %s30 = smul.u32 4, %s29
    $region13: #{tpu_custom_call.1} parent=1 // pred_fallthru
      _
    // Predicated region
    $region14: #{tpu_custom_call.1} parent=1 // pred_check
      _
    $region15: #{tpu_custom_call.1} parent=1 // pred_check_branch
      %32 = sbr.rel (0) target = $region17
    $region16: #{tpu_custom_call.1} parent=1 // pred_region
      %s33 = sadd.s32 0, 0
      %p34 = scmp.lt.s32.totalorder %s33, 0
      %s35 = scalar_select %p34, %s33, 0
      %s36 = smul.u32 4, %s35
      %p37 = scmp.lt.s32.totalorder %s36, 3
      %s38 = scalar_select %p37, %s36, 3
      %s39 = smul.addr %s38, 8
      %s40 = scalar_lea.vmem %s3, %s39
      %s41 = sadd.s32 0, 0
      %p42 = scmp.lt.s32.totalorder %s41, 0
      %s43 = scalar_select %p42, %s41, 0
      %s44 = smul.u32 4, %s43
    $region17: #{tpu_custom_call.1} parent=1 // pred_fallthru
      _
    %s45 = sadd.s32 0, 0
    %p46 = scmp.lt.s32.totalorder %s45, 0
    %s47 = scalar_select %p46, %s45, 0
    %s48 = smul.u32 4, %s47
    %p49 = scmp.lt.s32.totalorder %s48, 3
    %s50 = scalar_select %p49, %s48, 3
    %s51 = smul.addr %s50, 8
    %s52 = scalar_lea.vmem %s2, %s51
    %s53 = sadd.s32 0, 0
    %p54 = scmp.lt.s32.totalorder %s53, 0
    %s55 = scalar_select %p54, %s53, 0
    %s56 = smul.u32 4, %s55
    %p57 = scmp.lt.s32.totalorder %s56, 3
    %s58 = scalar_select %p57, %s56, 3
    %s59 = smul.addr %s58, 8
    %s60 = scalar_lea.vmem %s3, %s59
    %s61 = sadd.s32 0, 0
    %p62 = scmp.lt.s32.totalorder %s61, 0
    %s63 = scalar_select %p62, %s61, 0
    %s64 = smul.u32 4, %s63
    %p65 = scmp.lt.s32.totalorder %s64, 3
    %s66 = scalar_select %p65, %s64, 3
    %s67 = smul.addr %s66, 8
    %s68 = scalar_lea.vmem %s2, %s67
    %s69 = sadd.s32 0, 0
    %p70 = scmp.lt.s32.totalorder %s69, 0
    %s71 = scalar_select %p70, %s69, 0
    %s72 = smul.u32 4, %s71
    %s73 = sadd.s32 0, 0
    %p74 = scmp.lt.s32.totalorder %s73, 0
    %s75 = scalar_select %p74, %s73, 0
    %s76 = smul.u32 4, %s75
    %p77 = scmp.lt.s32.totalorder %s76, 3
    %s78 = scalar_select %p77, %s76, 3
    %s79 = smul.addr %s78, 8
    %s80 = scalar_lea.vmem %s3, %s79
    %s81 = sadd.s32 0, 0
    %p82 = scmp.lt.s32.totalorder %s81, 0
    %s83 = scalar_select %p82, %s81, 0
    %s84 = smul.u32 4, %s83
    %p85 = scmp.eq.s32.totalorder 0, 0
    // Predicated region
    $region18: #{tpu_custom_call.1} parent=1 // pred_check
      %p86 = pneg %p85
    $region19: #{tpu_custom_call.1} parent=1 // pred_check_branch
      %88 = sbr.rel (%p86) target = $region21
    $region20: #{tpu_custom_call.1} parent=1 // pred_region
      %vm89 = vcmask 122880
      %90 = vst.msk [vmem:[#allocation2] sm:$0x1] %vm89, 0.0
      %v91 = vld [vmem:[%s0] sm:$0x3]
      %v92 = vld [vmem:[%s1] sm:$0x3]
      %v93 = vadd.f32 %v92, 1.0
      %v94 = vmul.f32 %v91, %v91
      %v95 = vsub.f32 %v93, %v94
      %v96 = vmul.f32 %v92, 1.442695
      %v97 = vpow.pop %v96
      %v98 = vsub.f32 %v95, %v97
      %vm99 = vcmask 254976
      %v100 = vsel %vm99, %v98, 0.0
      %101 = vadd.xlane.f32.xlu0 %v100
      %v102 = vpop.xlane.xlu0 %101
      %v103 = vrot.slane %v102, 4
      %v104 = vadd.f32 %v102, %v103
      %v105 = vrot.slane %v104, 2
      %v106 = vadd.f32 %v104, %v105
      %v107 = vrot.slane %v106, 1
      %v108 = vadd.f32 %v106, %v107
      %s109 = vtos %v108
      %s110 = smul.f32 %s109, -0.25
      %p111 = scmp.eq.s32.totalorder 0, 0
      %s112 = scalar_select %p111, %s110, 0.0
      %s113 = scalar_lea.smem [#allocation3], 0
      %114 = sst [smem:[%s113]] %s112
    $region21: #{tpu_custom_call.1} parent=1 // pred_fallthru
      _
    %s115 = sadd.s32 0, 0
    %s116 = smul.u32 %s115, 32
    %v117 = vlaneseq
    %v118 = vshrl.u32 %v117, 7
    %v119 = vadd.s32 %v118, 8
    %v120 = vadd.s32 %v118, 16
    %v121 = vadd.s32 %v118, 24
    %v122 = vstv %s116
    %v123 = vadd.s32 %v118, %v122
    %v124 = vadd.s32 %v119, %v122
    %v125 = vadd.s32 %v120, %v122
    %v126 = vadd.s32 %v121, %v122
    %vm127 = vcmp.lt.s32.totalorder %v123, 32
    %vm128 = vcmp.lt.s32.totalorder %v124, 32
    %vm129 = vcmp.lt.s32.totalorder %v125, 32
    %vm130 = vcmp.lt.s32.totalorder %v126, 32
    %v131 = vld [vmem:[%s68] sm:$0xff]
    %v132 = vld [vmem:[%s68 + $0x8] sm:$0xff]
    %v133 = vld [vmem:[%s68 + $0x10] sm:$0xff]
    %v134 = vld [vmem:[%s68 + $0x18] sm:$0xff]
    %v135 = vld [vmem:[%s80] sm:$0xff]
    %v136 = vld [vmem:[%s80 + $0x8] sm:$0xff]
    %v137 = vld [vmem:[%s80 + $0x10] sm:$0xff]
    %v138 = vld [vmem:[%s80 + $0x18] sm:$0xff]
    %v139 = vsub.f32 %v131, %v135
    %v140 = vsub.f32 %v132, %v136
    %v141 = vsub.f32 %v133, %v137
    %v142 = vsub.f32 %v134, %v138
    %v143 = vand.u32 2147483647, %v139
    %v144 = vand.u32 2147483647, %v140
    %v145 = vand.u32 2147483647, %v141
    %v146 = vand.u32 2147483647, %v142
    %v147 = vsel %vm127, %v143, 0.0
    %v148 = vsel %vm128, %v144, 0.0
    %v149 = vsel %vm129, %v145, 0.0
    %v150 = vsel %vm130, %v146, 0.0
    %v151 = vld [vmem:[#allocation2] sm:$0x1]
    %vm152 = vcmask 130048
    %v153 = vsel %vm152, %v147, 0.0
    %v154 = vsel %vm152, %v148, 0.0
    %v155 = vadd.f32 %v153, %v154
    %v156 = vsel %vm152, %v149, 0.0
    %v157 = vadd.f32 %v155, %v156
    %v158 = vsel %vm152, %v150, 0.0
    %v159 = vadd.f32 %v157, %v158
    %v160 = vrot.slane %v159, 4
    %v161 = vadd.f32 %v159, %v160
    %v162 = vrot.slane %v161, 2
    %v163 = vadd.f32 %v161, %v162
    %v164 = vrot.slane %v163, 1
    %v165 = vadd.f32 %v163, %v164
    %v166 = vadd.f32 %v151, %v165
    %vm167 = vcmask 122880
    %168 = vst.msk [vmem:[#allocation2] sm:$0x1] %vm167, %v166
    // Predicated region
    $region22: #{tpu_custom_call.1} parent=1 // pred_check
      %p169 = pneg %p85
    $region23: #{tpu_custom_call.1} parent=1 // pred_check_branch
      %171 = sbr.rel (%p169) target = $region25
    $region24: #{tpu_custom_call.1} parent=1 // pred_region
      %v172 = vld [vmem:[#allocation2] sm:$0x1]
      %v173 = vsel %vm167, %v172, 0.0
      %174 = vadd.xlane.f32.xlu0 %v173
      %v175 = vpop.xlane.xlu0 %174
      %v176 = vrot.slane %v175, 4
      %v177 = vadd.f32 %v175, %v176
      %v178 = vrot.slane %v177, 2
      %v179 = vadd.f32 %v177, %v178
      %v180 = vrot.slane %v179, 1
      %v181 = vadd.f32 %v179, %v180
      %s182 = vtos %v181
      %s183 = scalar_lea.smem [#allocation5], 0
      %184 = sst [smem:[%s183]] %s182
    $region25: #{tpu_custom_call.1} parent=1 // pred_fallthru
      _
    // Predicated region
    $region26: #{tpu_custom_call.1} parent=1 // pred_check
      _
    $region27: #{tpu_custom_call.1} parent=1 // pred_check_branch
      %186 = sbr.rel (0) target = $region29
    $region28: #{tpu_custom_call.1} parent=1 // pred_region
      %188 = vsyncadd [#allocation4], 0
      %s190 = sshll.u32 %s4, 4
      %s191 = int_to_ptr.hbm [resolvable:$true] %s190
      %193 = dma.smem_to_hbm [#allocation3], 16, %s191, [#allocation4]
    $region29: #{tpu_custom_call.1} parent=1 // pred_fallthru
      _
    // Predicated region
    $region30: #{tpu_custom_call.1} parent=1 // pred_check
      _
    $region31: #{tpu_custom_call.1} parent=1 // pred_check_branch
      %195 = sbr.rel (0) target = $region33
    $region32: #{tpu_custom_call.1} parent=1 // pred_region
      %197 = vsyncadd [#allocation6], 0
      %s199 = sshll.u32 %s5, 4
      %s200 = int_to_ptr.hbm [resolvable:$true] %s199
      %202 = dma.smem_to_hbm [#allocation5], 16, %s200, [#allocation6]
    $region33: #{tpu_custom_call.1} parent=1 // pred_fallthru
      _
    // Predicated region
    $region34: #{tpu_custom_call.1} parent=1 // pred_check
      _
    $region35: #{tpu_custom_call.1} parent=1 // pred_check_branch
      %204 = sbr.rel (0) target = $region37
    $region36: #{tpu_custom_call.1} parent=1 // pred_region
      %206 = dma.done [#allocation4], 16
    $region37: #{tpu_custom_call.1} parent=1 // pred_fallthru
      _
    // Predicated region
    $region38: #{tpu_custom_call.1} parent=1 // pred_check
      _
    $region39: #{tpu_custom_call.1} parent=1 // pred_check_branch
      %208 = sbr.rel (0) target = $region41
    $region40: #{tpu_custom_call.1} parent=1 // pred_region
      %210 = dma.done [#allocation6], 16
    $region41: #{tpu_custom_call.1} parent=1 // pred_fallthru
      _
    %211 = sfence
    %212 = vsyncpa [#allocation4], 1
    %213 = vsyncpa [#allocation6], 1

</llo_original>
